<compile_context>
chip_gen: v6e
topology: v6e:2x2x1
jax: 0.10.0
libtpu: 0.0.40
codegen_flags: <defaults>
</compile_context>

<pallas_src>
import functools

import jax
import jax.numpy as jnp
from jax.experimental import pallas as pl
from jax.experimental.pallas import tpu as pltpu


def _label_smooth_kernel(x_ref, t_ref, out_ref, *, uniform_w, smoothing, n_rows,
                         tile_rows):
    """One row-tile: fused label-smoothed NLL -> one scalar partial sum."""
    x = x_ref[...].astype(jnp.float32)        # (TM, C) f32 (upcast if bf16)
    t = t_ref[...]                            # (TM, 1) i32

    # Numerically stable logsumexp along the class (lane) axis.
    m = jnp.max(x, axis=-1, keepdims=True)                               # XLU
    lse = m + jnp.log(jnp.sum(jnp.exp(x - m), axis=-1, keepdims=True))   # EUP+XLU

    # w_c = smoothing/num_classes + (1 - smoothing) * onehot_c(target)
    col = jax.lax.broadcasted_iota(jnp.int32, x.shape, 1)
    w = uniform_w + (1.0 - smoothing) * (col == t).astype(jnp.float32)

    # Per-element w * (lse - x) = -w * log_softmax(x): non-negative terms,
    # no cancellation between sum_w*lse and sum(w*x).
    row_loss = jnp.sum(w * (lse - x), axis=-1, keepdims=True)            # (TM, 1)

    # Mask ragged tail rows (global row index >= n_rows): the partial last
    # block is padded with garbage, so zero those rows before reducing.
    rows = (pl.program_id(0) * tile_rows
            + jax.lax.broadcasted_iota(jnp.int32, (tile_rows, 1), 0))
    row_loss = jnp.where(rows < n_rows, row_loss, 0.0)

    # Per-tile scalar partial sum (independent output block per grid step).
    out_ref[0] = jnp.sum(row_loss, axis=0, keepdims=True)

    # TODO(synk): for very large C (real vocab sizes, esp. on v7x's 64 MiB VMEM)
    # add a second "arbitrary" grid axis over class tiles with online logsumexp
    # + running weighted-sum accumulators so the (TM, C) block stays bounded.
    # TODO(synk): if v7x profiling shows the 2 XLU slots binding at small C,
    # move the two lane sums onto the idle MXU via jnp.dot(vals, ones((C, 1))).


def label_smooth_loss(logits, targets, *, smoothing, num_classes=None):
    """logits: (..., C) f32/bf16, targets: (...,) int. Returns scalar f32 loss."""
    C = logits.shape[-1]
    x2d = logits.reshape(-1, C)
    N = x2d.shape[0]
    t2d = targets.reshape(-1).astype(jnp.int32).reshape(N, 1)
    if not num_classes:
        num_classes = C

    itemsize = jnp.dtype(x2d.dtype).itemsize
    sub = 16 if itemsize == 2 else 8           # bf16 minimum sublane tile is 16

    # Per-input-buffer byte budget from physical VMEM (double-buffered -> 2x).
    # Fallback = 64 MiB (v7x, the most constrained generation).
    try:
        vmem_cap = int(pltpu.get_tpu_info().vmem_capacity_bytes)
    except Exception:
        vmem_cap = 64 * 1024 * 1024
    buf_budget = vmem_cap // 8                  # ~8 MiB on v7x, ~16 MiB on v5e/v6e

    tm = max(sub, (buf_budget // (C * itemsize)) // sub * sub)
    tm = min(tm, ((N + sub - 1) // sub) * sub)  # don't exceed (rounded) row count
    tm = max(sub, tm)
    n_tiles = pl.cdiv(N, tm)

    # Exact scoped-VMEM requirement: double-buffered logits + targets + output.
    est_vmem = 2 * (tm * C * itemsize) + 2 * (tm * 4) + 2 * 4
    vmem_limit = None
    if est_vmem > 12 * 1024 * 1024:
        vmem_limit = int(min(est_vmem + (8 << 20), (vmem_cap * 3) // 4))

    kernel = functools.partial(
        _label_smooth_kernel,
        uniform_w=float(smoothing) / float(num_classes),
        smoothing=float(smoothing),
        n_rows=N,
        tile_rows=tm,
    )

    partials = pl.pallas_call(
        kernel,
        out_shape=jax.ShapeDtypeStruct((n_tiles, 1, 1), jnp.float32),
        grid_spec=pltpu.PrefetchScalarGridSpec(
            num_scalar_prefetch=0,
            grid=(n_tiles,),
            in_specs=[
                pl.BlockSpec((tm, C), lambda i: (i, 0)),   # logits row tile
                pl.BlockSpec((tm, 1), lambda i: (i, 0)),   # target row tile
            ],
            out_specs=pl.BlockSpec((1, 1, 1), lambda i: (i, 0, 0)),  # tile scalar
        ),
        compiler_params=pltpu.CompilerParams(
            dimension_semantics=("parallel",),   # independent tiles -> megacore OK
            vmem_limit_bytes=vmem_limit,
        ),
    )(x2d, t2d)

    # Tiny final reduction over n_tiles partials; mean over the true row count.
    return jnp.sum(partials) / jnp.float32(N)


def _reference(logits, targets, smoothing, num_classes):
    log_prob = jax.nn.log_softmax(logits.astype(jnp.float32), axis=-1)
    C = logits.shape[-1]
    w = jnp.full(logits.shape, smoothing / num_classes, dtype=jnp.float32)
    onehot = jax.nn.one_hot(targets, C, dtype=jnp.float32)
    w = w * (1.0 - onehot) + onehot * (1.0 - smoothing + smoothing / num_classes)
    return (-w * log_prob).sum(axis=-1).mean()


if __name__ == "__main__":
    smoothing = 0.1
    key = jax.random.PRNGKey(0)
    k1, k2, k3, k4 = jax.random.split(key, 4)

    # Aligned case.
    N, C = 16, 128
    logits = jax.random.normal(k1, (N, C), dtype=jnp.float32)
    targets = jax.random.randint(k2, (N,), 0, C, dtype=jnp.int32)
    loss = jax.block_until_ready(
        label_smooth_loss(logits, targets, smoothing=smoothing, num_classes=C))
    ref = _reference(logits, targets, smoothing, C)
    assert jnp.allclose(loss, ref, rtol=1e-5, atol=1e-5), (loss, ref)

    # Ragged case (N not a multiple of the sublane tile): exercises the
    # in-kernel tail mask that replaced jnp.pad.
    N2 = 13
    logits2 = jax.random.normal(k3, (N2, C), dtype=jnp.float32)
    targets2 = jax.random.randint(k4, (N2,), 0, C, dtype=jnp.int32)
    loss2 = jax.block_until_ready(
        label_smooth_loss(logits2, targets2, smoothing=smoothing, num_classes=C))
    ref2 = _reference(logits2, targets2, smoothing, C)
    assert jnp.allclose(loss2, ref2, rtol=1e-5, atol=1e-5), (loss2, ref2)

    print("KERNEL_OK")
</pallas_src>

<mosaic_0001>
module attributes {stable_mosaic.version = 11 : i64} {
  func.func @_label_smooth_kernel(%arg0: i32, %arg1: memref<16x128xf32, #tpu.memory_space<vmem>>, %arg2: memref<16x1xi32, #tpu.memory_space<vmem>>, %arg3: memref<1x1x1xf32, #tpu.memory_space<vmem>>) attributes {dimension_semantics = [#tpu.dimension_semantics<parallel>], iteration_bounds = array<i64: 1>, scalar_prefetch = 0 : i64, scratch_operands = 0 : i64, tpu.core_type = #tpu.core_type<tc>, window_params = [{transform_indices = @transform_0, window_bounds = array<i64: 16, 128>}, {transform_indices = @transform_1, window_bounds = array<i64: 16, 1>}, {transform_indices = @transform_2, window_bounds = array<i64: 1, 1, 1>}]} {
    %c0 = arith.constant 0 : index
    %c0_0 = arith.constant 0 : index
    %0 = vector.load %arg1[%c0, %c0_0] : memref<16x128xf32, #tpu.memory_space<vmem>>, vector<16x128xf32>
    %c0_1 = arith.constant 0 : index
    %c0_2 = arith.constant 0 : index
    %1 = vector.load %arg2[%c0_1, %c0_2] : memref<16x1xi32, #tpu.memory_space<vmem>>, vector<16x1xi32>
    %cst = arith.constant dense<0xFF800000> : vector<16xf32>
    %2 = vector.multi_reduction <maximumf>, %0, %cst [1] : vector<16x128xf32> to vector<16xf32>
    %3 = vector.shape_cast %2 : vector<16xf32> to vector<16x1xf32>
    %4 = vector.broadcast %3 : vector<16x1xf32> to vector<16x128xf32>
    %5 = arith.subf %0, %4 : vector<16x128xf32>
    %6 = math.exp %5 : vector<16x128xf32>
    %cst_3 = arith.constant dense<0.000000e+00> : vector<16xf32>
    %7 = vector.multi_reduction <add>, %6, %cst_3 [1] : vector<16x128xf32> to vector<16xf32>
    %8 = vector.shape_cast %7 : vector<16xf32> to vector<16x1xf32>
    %9 = math.log %8 : vector<16x1xf32>
    %10 = arith.addf %3, %9 : vector<16x1xf32>
    %11 = tpu.iota {dimensions = array<i32: 1>} : vector<16x128xi32>
    %12 = vector.broadcast %1 : vector<16x1xi32> to vector<16x128xi32>
    %13 = arith.cmpi eq, %11, %12 : vector<16x128xi32>
    %14 = arith.extui %13 : vector<16x128xi1> to vector<16x128xi32>
    %15 = arith.sitofp %14 : vector<16x128xi32> to vector<16x128xf32>
    %cst_4 = arith.constant 0.899999976 : f32
    %16 = vector.broadcast %cst_4 : f32 to vector<16x128xf32>
    %17 = arith.mulf %16, %15 : vector<16x128xf32>
    %cst_5 = arith.constant 7.812500e-04 : f32
    %18 = vector.broadcast %cst_5 : f32 to vector<16x128xf32>
    %19 = arith.addf %18, %17 : vector<16x128xf32>
    %20 = vector.broadcast %10 : vector<16x1xf32> to vector<16x128xf32>
    %21 = arith.subf %20, %0 : vector<16x128xf32>
    %22 = arith.mulf %19, %21 : vector<16x128xf32>
    %cst_6 = arith.constant dense<0.000000e+00> : vector<16xf32>
    %23 = vector.multi_reduction <add>, %22, %cst_6 [1] : vector<16x128xf32> to vector<16xf32>
    %24 = vector.shape_cast %23 : vector<16xf32> to vector<16x1xf32>
    %c16_i32 = arith.constant 16 : i32
    %25 = arith.muli %arg0, %c16_i32 : i32
    %26 = tpu.iota {dimensions = array<i32: 0>} : vector<16x1xi32>
    %27 = vector.broadcast %25 : i32 to vector<16x1xi32>
    %28 = arith.addi %27, %26 : vector<16x1xi32>
    %c16_i32_7 = arith.constant 16 : i32
    %29 = vector.broadcast %c16_i32_7 : i32 to vector<16x1xi32>
    %30 = arith.cmpi slt, %28, %29 : vector<16x1xi32>
    %cst_8 = arith.constant 0.000000e+00 : f32
    %31 = vector.broadcast %cst_8 : f32 to vector<16x1xf32>
    %32 = arith.select %30, %24, %31 : vector<16x1xi1>, vector<16x1xf32>
    %cst_9 = arith.constant dense<0.000000e+00> : vector<1xf32>
    %33 = vector.multi_reduction <add>, %32, %cst_9 [0] : vector<16x1xf32> to vector<1xf32>
    %34 = vector.shape_cast %33 : vector<1xf32> to vector<1x1xf32>
    %c0_10 = arith.constant 0 : index
    %c0_11 = arith.constant 0 : index
    %c0_12 = arith.constant 0 : index
    %35 = vector.load %arg3[%c0_10, %c0_11, %c0_12] : memref<1x1x1xf32, #tpu.memory_space<vmem>>, vector<1x1x1xf32>
    %36 = vector.shape_cast %35 : vector<1x1x1xf32> to vector<1x1xf32>
    %37 = vector.shape_cast %34 : vector<1x1xf32> to vector<1x1x1xf32>
    tpu.vector_store %arg3[%c0_10, %c0_11, %c0_12], %37 {strides = array<i32>} : memref<1x1x1xf32, #tpu.memory_space<vmem>>, vector<1x1x1xf32>,
    return
  }
  func.func @transform_0(%arg0: i32) -> (i32, i32) {
    %c0_i32 = arith.constant 0 : i32
    %c0_i32_0 = arith.constant 0 : i32
    return %arg0, %c0_i32 : i32, i32
  }
  func.func @transform_1(%arg0: i32) -> (i32, i32) {
    %c0_i32 = arith.constant 0 : i32
    %c0_i32_0 = arith.constant 0 : i32
    return %arg0, %c0_i32 : i32, i32
  }
  func.func @transform_2(%arg0: i32) -> (i32, i32, i32) {
    %c0_i32 = arith.constant 0 : i32
    %c0_i32_0 = arith.constant 0 : i32
    %c0_i32_1 = arith.constant 0 : i32
    return %arg0, %c0_i32, %c0_i32_0 : i32, i32, i32
  }
}

</mosaic_0001>

<llo_original>
// kernel: tpu_custom_call.1
$region0: #{tpu_custom_call.1}
  #allocation0 [shape = 'u32[]', space=smem, size = 0x4, offset = 0x4, fixed_abs, tag = 'smem constant byte address 0x4 - core index']
  #allocation1 [shape = 'u32[144,128]{1,0:T(1,128)}', space=vmem, size = 0x12000, scoped, tag = 'internal scratch']
  %s0 = inlined_call_operand.vmem [shape: f32[16,128], index: 0, kind: input, shape index: {}]
  %s1 = inlined_call_operand.vmem [shape: s32[16,1], index: 1, kind: input, shape index: {}]
  %s2 = inlined_call_operand.hbm [shape: f32[1,1,1], index: 2, kind: output, shape index: {}]
  %s3 = sld [smem:[#allocation0]]
  $region18: #{tpu_custom_call.1} parent=0
    _
  %s5 = ssub.s32 1, %s3
  %s6 = scalar_select 0, %s5, %s3
  $region1: #{tpu_custom_call.1} parent=0
    #allocation2 [shape = 'u8[512]{0}', space=vmem, size = 0x400, scoped, tag = 'output window, operand 0, single buffered']
    #allocation3 [shape = 's32[1]{0}', space=sflag, size = 0x4, scoped, tag = 'scoped memory for tpu_custom_call.1']
    %7 = vsyncpa [#allocation3], 0
    // Predicated region
    $region2: #{tpu_custom_call.1} parent=1 // pred_check
      _
    $region3: #{tpu_custom_call.1} parent=1 // pred_check_branch
      %9 = sbr.rel (0) target = $region5
    $region4: #{tpu_custom_call.1} parent=1 // pred_region
      _
    $region5: #{tpu_custom_call.1} parent=1 // pred_fallthru
      _
    // Predicated region
    $region6: #{tpu_custom_call.1} parent=1 // pred_check
      _
    $region7: #{tpu_custom_call.1} parent=1 // pred_check_branch
      %11 = sbr.rel (0) target = $region9
    $region8: #{tpu_custom_call.1} parent=1 // pred_region
      _
    $region9: #{tpu_custom_call.1} parent=1 // pred_fallthru
      _
    %v12 = vld [vmem:[%s0] sm:$0xff]
    %v13 = vld [vmem:[%s0 + $0x8] sm:$0xff]
    %v14 = vld [vmem:[%s1] sm:$0xff]
    %v15 = vld [vmem:[%s1 + $0x8] sm:$0xff]
    %16 = vmax.xlane.f32.xlu0 %v12
    %v17 = vpop.xlane.xlu0 %16
    %18 = vmax.xlane.f32.xlu0 %v13
    %v19 = vpop.xlane.xlu0 %18
    %v20 = vsub.f32 %v12, %v17
    %v21 = vsub.f32 %v13, %v19
    %v22 = vmul.f32 %v20, 1.442695
    %v23 = vpow.pop %v22
    %v24 = vmul.f32 %v21, 1.442695
    %v25 = vpow.pop %v24
    %26 = vadd.xlane.f32.xlu0 %v23
    %v27 = vpop.xlane.xlu0 %26
    %28 = vadd.xlane.f32.xlu0 %v25
    %v29 = vpop.xlane.xlu0 %28
    %v30 = vlog2.pop %v27
    %v31 = vmul.f32 %v30, 0.6931472
    %v32 = vlog2.pop %v29
    %v33 = vmul.f32 %v32, 0.6931472
    %v34 = vadd.f32 %v17, %v31
    %v35 = vadd.f32 %v19, %v33
    %v36 = vlaneseq
    %v37 = vand.u32 %v36, 127
    %38 = vset.pattern.permute.xlu0 0
    %39 = vperm.xlu0 %38, %v14
    %v40 = vpop.permute.xlu0 %39
    %41 = vset.pattern.permute.xlu0 0
    %42 = vperm.xlu0 %41, %v15
    %v43 = vpop.permute.xlu0 %42
    %vm44 = vcmp.eq.s32.totalorder %v37, %v40
    %vm45 = vcmp.eq.s32.totalorder %v37, %v43
    %v46 = vsel %vm44, 1, 0
    %v47 = vsel %vm45, 1, 0
    %v48 = vcvt.s32.f32 %v46
    %v49 = vcvt.s32.f32 %v47
    %v50 = vmul.f32 %v48, 0.9
    %v51 = vmul.f32 %v49, 0.9
    %v52 = vadd.f32 %v50, 0.00078125
    %v53 = vadd.f32 %v51, 0.00078125
    %v54 = vsub.f32 %v34, %v12
    %v55 = vsub.f32 %v35, %v13
    %v56 = vmul.f32 %v52, %v54
    %v57 = vmul.f32 %v53, %v55
    %58 = vadd.xlane.f32.xlu0 %v56
    %v59 = vpop.xlane.xlu0 %58
    %60 = vadd.xlane.f32.xlu0 %v57
    %v61 = vpop.xlane.xlu0 %60
    %s62 = smul.u32 0, 16
    %v63 = vlaneseq
    %v64 = vshrl.u32 %v63, 7
    %v65 = vadd.s32 %v64, 8
    %v66 = vstv %s62
    %v67 = vadd.s32 %v66, %v64
    %v68 = vadd.s32 %v66, %v65
    %vm69 = vcmp.lt.s32.totalorder %v67, 16
    %vm70 = vcmp.lt.s32.totalorder %v68, 16
    %v71 = vsel %vm69, %v59, 0.0
    %v72 = vsel %vm70, %v61, 0.0
    %v73 = vadd.f32 %v71, %v72
    %v74 = vrot.slane %v73, 4
    %v75 = vadd.f32 %v73, %v74
    %v76 = vrot.slane %v75, 2
    %v77 = vadd.f32 %v75, %v76
    %v78 = vrot.slane %v77, 1
    %v79 = vadd.f32 %v77, %v78
    %vm80 = vcmask 0
    %81 = vst.msk [vmem:[#allocation2] sm:$0x1] %vm80, %v79
    // Predicated region
    $region10: #{tpu_custom_call.1} parent=1 // pred_check
      _
    $region11: #{tpu_custom_call.1} parent=1 // pred_check_branch
      %83 = sbr.rel (0) target = $region13
    $region12: #{tpu_custom_call.1} parent=1 // pred_region
      %s85 = ssub.s32 16, 16
      %86 = vsyncadd [#allocation3], %s85
      %s88 = sshll.u32 [#allocation2], 4
      %s89 = int_to_ptr.vmem [resolvable:$true] %s88
      %91 = dma.vmem_to_hbm [thread:$0]  %s89, 16, %s2, [#allocation3]
    $region13: #{tpu_custom_call.1} parent=1 // pred_fallthru
      _
    // Predicated region
    $region14: #{tpu_custom_call.1} parent=1 // pred_check
      _
    $region15: #{tpu_custom_call.1} parent=1 // pred_check_branch
      %93 = sbr.rel (0) target = $region17
    $region16: #{tpu_custom_call.1} parent=1 // pred_region
      %94 = dma.done [#allocation3], 16
    $region17: #{tpu_custom_call.1} parent=1 // pred_fallthru
      _
    %95 = vsyncpa [#allocation3], 1

</llo_original>
